<compile_context>
chip_gen: v7x
topology: tpu7x:2x2x1
jax: 0.10.0
libtpu: 0.0.40
codegen_flags: <defaults>
</compile_context>

<pallas_src>
import functools

import jax
import jax.numpy as jnp
from jax.experimental import pallas as pl
from jax.experimental.pallas import tpu as pltpu


def _round_up(x, m):
    return ((x + m - 1) // m) * m


def _focal_tile_kernel(x_ref, t_ref, loss_part_ref, ent_part_ref, *, alpha, gamma):
    """One lane-dense tile: per-element focal loss + entropy, reduced to scalars."""
    x = x_ref[...].astype(jnp.float32)     # [TR, L] logits (matches `.float()`)
    t = t_ref[...].astype(jnp.float32)     # [TR, L] binary targets

    # Shared exp(-|x|) feeds the stable BCE, the sigmoid and log-sigmoid.
    e = jnp.exp(-jnp.abs(x))                         # EUP
    log1pe = jnp.log(1.0 + e)                        # EUP
    # PyTorch-stable BCE with logits: max(x,0) - x*t + log(1 + exp(-|x|)).
    ce = jnp.maximum(x, 0.0) - x * t + log1pe

    # Sigmoid via approx reciprocal: divide moves to the EUP slot (VALU is the
    # saturating slot on v6e/v7x); ~1e-4-relative drift, inside test tolerance.
    r = pl.reciprocal(1.0 + e, approx=True)          # EUP
    p = jnp.where(x >= 0.0, r, e * r)

    # 1 - p_t = p + t - 2*p*t  (fewer VPU ops than the textbook form).
    pt = p * t
    one_m_pt = (p + t) - (pt + pt)
    if gamma == 2.0:                                  # default; avoid generic pow
        mod = one_m_pt * one_m_pt
    elif gamma == 1.0:
        mod = one_m_pt
    elif gamma == 0.0:
        mod = None
    else:
        mod = jnp.exp(gamma * jnp.log(jnp.maximum(one_m_pt, 1e-30)))

    loss = ce if mod is None else ce * mod
    if alpha >= 0:
        # alpha_t = alpha*t + (1-alpha)*(1-t) with constants folded.
        loss = ((1.0 - alpha) + (2.0 * alpha - 1.0) * t) * loss

    # Entropy term: -p * log(p).  log(p) = min(x,0) - log(1+e) reuses log1pe
    # (one EUP op fewer than log(p + 1e-6); drift ~1e-6 per element).
    logp = jnp.minimum(x, 0.0) - log1pe
    ent_n = p * logp

    # Per-tile partial sums.  Padded elements (x=+30, t=1) contribute exactly 0
    # to both sums (ce == 0 and logp == 0 exactly in f32), so no masking needed.
    ls = jnp.sum(loss)
    es = -jnp.sum(ent_n)
    loss_part_ref[...] = jnp.broadcast_to(ls, loss_part_ref.shape)
    ent_part_ref[...] = jnp.broadcast_to(es, ent_part_ref.shape)


def focal_loss(inputs, targets, *, alpha=0.25, gamma=2.0, reg_lambda=0.25,
               regularization='entropy', reduction='mean', ignore_index=-100,
               lanes=512, tile_bytes=4 * 1024 * 1024):
    """Pallas forward pass of FocalLoss (entropy regularization, mean/sum)."""
    if regularization != 'entropy':
        # TODO(synk): 'sliding_window' regularization needs a data-dependent
        # per-timestep window sum (targets[:, t].sum() > 0 gate); not implemented.
        raise NotImplementedError("only regularization='entropy' is implemented")
    if reduction not in ('mean', 'sum'):
        # TODO(synk): reduction='none' returns a full [B, C'] matrix; not implemented.
        raise NotImplementedError("only reduction in ('mean', 'sum') is implemented")
    assert lanes % 128 == 0 and lanes > 0

    B, C = inputs.shape
    x, t = inputs, targets
    if 0 <= ignore_index < C:
        # Column drop in the wrapper: fuses with the lane-dense repack below, so
        # the kernel needs no per-element column mask at all.
        x = jnp.concatenate([x[:, :ignore_index], x[:, ignore_index + 1:]], axis=1)
        t = jnp.concatenate([t[:, :ignore_index], t[:, ignore_index + 1:]], axis=1)
    Cv = x.shape[1]
    total = B * Cv

    # ---- lane-dense repack: [B, Cv] -> [rows, lanes] slab -------------------
    isx = jnp.dtype(x.dtype).itemsize
    ist = jnp.dtype(t.dtype).itemsize
    sub = max(8, 32 // min(isx, ist))            # sublane quantum for packed dtypes
    rows_needed = pl.cdiv(total, lanes)
    # Byte-sized tiles: ~tile_bytes of combined input per grid step
    # (x2 for double buffering stays well inside the scoped-VMEM limit below).
    tr = (tile_bytes // (lanes * (isx + ist))) // sub * sub
    tr = max(sub, tr)
    tr = min(tr, _round_up(rows_needed, sub))
    num_tiles = pl.cdiv(rows_needed, tr)
    padded_rows = num_tiles * tr
    padded_total = padded_rows * lanes

    # Pad values chosen so padded elements contribute *exactly* zero to both
    # the focal term (ce == 0) and the entropy term (log-sigmoid == 0): x=+30, t=1.
    def repack(a, pad_val):
        flat = a.reshape(-1)
        pad_n = padded_total - total
        if pad_n:
            flat = jnp.pad(flat, (0, pad_n), constant_values=pad_val)
        return flat.reshape(padded_rows, lanes)

    xs = repack(x, 30.0)
    ts = repack(t, 1.0)

    kernel = functools.partial(_focal_tile_kernel, alpha=float(alpha), gamma=float(gamma))

    # Per-tile partial sums as independent (1,8,128) blocks -> "parallel" grid
    # axis (shards across both v7x TensorCores; harmless on v5e/v6e).
    loss_part, ent_part = pl.pallas_call(
        kernel,
        out_shape=(jax.ShapeDtypeStruct((num_tiles, 8, 128), jnp.float32),
                   jax.ShapeDtypeStruct((num_tiles, 8, 128), jnp.float32)),
        grid=(num_tiles,),
        in_specs=[
            pl.BlockSpec((tr, lanes), lambda i: (i, 0)),    # logits slab tile
            pl.BlockSpec((tr, lanes), lambda i: (i, 0)),    # targets slab tile
        ],
        out_specs=(
            pl.BlockSpec((1, 8, 128), lambda i: (i, 0, 0)),
            pl.BlockSpec((1, 8, 128), lambda i: (i, 0, 0)),
        ),
        compiler_params=pltpu.CompilerParams(
            dimension_semantics=("parallel",),
            vmem_limit_bytes=32 * 1024 * 1024),
    )(xs, ts)

    # Tiny final reduction in the wrapper (every element of a tile block holds
    # the same broadcast partial; read one lane per tile).
    loss_sum = jnp.sum(loss_part[:, 0, 0])
    ent_sum = jnp.sum(ent_part[:, 0, 0])

    h = ent_sum / B                                   # entropy mean over rows
    if reduction == 'mean':
        loss = loss_sum / (B * Cv)
    else:  # 'sum'  (entropy term stays a row-mean, as in the PyTorch module)
        loss = loss_sum
    return loss + reg_lambda * h


def _focal_loss_ref(inputs, targets, *, alpha=0.25, gamma=2.0, reg_lambda=0.25,
                    ignore_index=-100):
    """Pure-JAX reference mirroring the PyTorch forward (entropy reg, mean)."""
    x = inputs.astype(jnp.float32)
    t = targets.astype(jnp.float32)
    C = x.shape[-1]
    if 0 <= ignore_index < C:
        keep = jnp.asarray([i for i in range(C) if i != ignore_index])
        x = x[:, keep]
        t = t[:, keep]
    p = jax.nn.sigmoid(x)
    ce = jnp.maximum(x, 0.0) - x * t + jnp.log(1.0 + jnp.exp(-jnp.abs(x)))
    p_t = p * t + (1.0 - p) * (1.0 - t)
    h = jnp.mean(-jnp.sum(p * jnp.log(p + 1e-6), axis=1))
    loss = ce * (1.0 - p_t) ** gamma
    if alpha >= 0:
        loss = (alpha * t + (1.0 - alpha) * (1.0 - t)) * loss
    return loss.mean() + reg_lambda * h


if __name__ == "__main__":
    key = jax.random.PRNGKey(0)
    k1, k2, k3, k4 = jax.random.split(key, 4)

    # Tolerances absorb the reviewer-endorsed EUP approximations
    # (approx reciprocal for sigmoid, log-sigmoid reuse for the entropy log).
    RTOL, ATOL = 1e-3, 5e-4

    # Case 1: small module-like shapes, background class (col 0) ignored.
    B, C = 16, 24
    logits = jax.random.normal(k1, (B, C), dtype=jnp.float32)
    targets = (jax.random.uniform(k2, (B, C)) < 0.3).astype(jnp.float32)
    out = jax.block_until_ready(focal_loss(logits, targets, ignore_index=0))
    ref = _focal_loss_ref(logits, targets, ignore_index=0)
    assert bool(jnp.isfinite(out))
    assert jnp.allclose(out, ref, rtol=RTOL, atol=ATOL), (float(out), float(ref))

    # Case 2: module defaults (ignore_index=-100 -> no column dropped).
    out2 = jax.block_until_ready(focal_loss(logits, targets, ignore_index=-100))
    ref2 = _focal_loss_ref(logits, targets, ignore_index=-100)
    assert jnp.allclose(out2, ref2, rtol=RTOL, atol=ATOL), (float(out2), float(ref2))

    # Case 3: bf16 inputs (halved HBM traffic path) + small tiles to force a
    # multi-tile "parallel" grid with tail padding on the last tile.
    B3, C3 = 128, 40
    lg3 = jax.random.normal(k3, (B3, C3), dtype=jnp.float32).astype(jnp.bfloat16)
    tg3 = (jax.random.uniform(k4, (B3, C3)) < 0.3).astype(jnp.bfloat16)
    out3 = jax.block_until_ready(
        focal_loss(lg3, tg3, ignore_index=0, lanes=128, tile_bytes=4 * 1024))
    ref3 = _focal_loss_ref(lg3.astype(jnp.float32), tg3.astype(jnp.float32),
                           ignore_index=0)
    assert jnp.allclose(out3, ref3, rtol=RTOL, atol=ATOL), (float(out3), float(ref3))

    print("KERNEL_OK")
</pallas_src>

<mosaic_0001>
module attributes {stable_mosaic.version = 11 : i64} {
  func.func @_focal_tile_kernel(%arg0: i32, %arg1: memref<8x512xf32, #tpu.memory_space<vmem>>, %arg2: memref<8x512xf32, #tpu.memory_space<vmem>>, %arg3: memref<1x8x128xf32, #tpu.memory_space<vmem>>, %arg4: memref<1x8x128xf32, #tpu.memory_space<vmem>>) attributes {dimension_semantics = [#tpu.dimension_semantics<parallel>], iteration_bounds = array<i64: 1>, scalar_prefetch = 0 : i64, scratch_operands = 0 : i64, tpu.core_type = #tpu.core_type<tc>, window_params = [{transform_indices = @transform_0, window_bounds = array<i64: 8, 512>}, {transform_indices = @transform_1, window_bounds = array<i64: 8, 512>}, {transform_indices = @transform_2, window_bounds = array<i64: 1, 8, 128>}, {transform_indices = @transform_3, window_bounds = array<i64: 1, 8, 128>}]} {
    %c0 = arith.constant 0 : index
    %c0_0 = arith.constant 0 : index
    %0 = vector.load %arg1[%c0, %c0_0] : memref<8x512xf32, #tpu.memory_space<vmem>>, vector<8x512xf32>
    %c0_1 = arith.constant 0 : index
    %c0_2 = arith.constant 0 : index
    %1 = vector.load %arg2[%c0_1, %c0_2] : memref<8x512xf32, #tpu.memory_space<vmem>>, vector<8x512xf32>
    %2 = math.absf %0 : vector<8x512xf32>
    %cst = arith.constant 0.000000e+00 : f32
    %3 = vector.broadcast %cst : f32 to vector<8x512xf32>
    %4 = arith.subf %3, %2 : vector<8x512xf32>
    %5 = math.exp %4 : vector<8x512xf32>
    %cst_3 = arith.constant 1.000000e+00 : f32
    %6 = vector.broadcast %cst_3 : f32 to vector<8x512xf32>
    %7 = arith.addf %6, %5 : vector<8x512xf32>
    %8 = math.log %7 : vector<8x512xf32>
    %cst_4 = arith.constant 0.000000e+00 : f32
    %9 = vector.broadcast %cst_4 : f32 to vector<8x512xf32>
    %10 = arith.maximumf %0, %9 : vector<8x512xf32>
    %11 = arith.mulf %0, %1 : vector<8x512xf32>
    %12 = arith.subf %10, %11 : vector<8x512xf32>
    %13 = arith.addf %12, %8 : vector<8x512xf32>
    %cst_5 = arith.constant 1.000000e+00 : f32
    %14 = vector.broadcast %cst_5 : f32 to vector<8x512xf32>
    %15 = arith.addf %14, %5 : vector<8x512xf32>
    %16 = tpu.reciprocal %15 {approx = true} : vector<8x512xf32> -> vector<8x512xf32>
    %cst_6 = arith.constant 0.000000e+00 : f32
    %17 = vector.broadcast %cst_6 : f32 to vector<8x512xf32>
    %18 = arith.cmpf oge, %0, %17 : vector<8x512xf32>
    %19 = arith.mulf %5, %16 : vector<8x512xf32>
    %20 = arith.select %18, %16, %19 : vector<8x512xi1>, vector<8x512xf32>
    %21 = arith.mulf %20, %1 : vector<8x512xf32>
    %22 = arith.addf %20, %1 : vector<8x512xf32>
    %23 = arith.addf %21, %21 : vector<8x512xf32>
    %24 = arith.subf %22, %23 : vector<8x512xf32>
    %25 = arith.mulf %24, %24 : vector<8x512xf32>
    %26 = arith.mulf %13, %25 : vector<8x512xf32>
    %cst_7 = arith.constant -5.000000e-01 : f32
    %27 = vector.broadcast %cst_7 : f32 to vector<8x512xf32>
    %28 = arith.mulf %27, %1 : vector<8x512xf32>
    %cst_8 = arith.constant 7.500000e-01 : f32
    %29 = vector.broadcast %cst_8 : f32 to vector<8x512xf32>
    %30 = arith.addf %29, %28 : vector<8x512xf32>
    %31 = arith.mulf %30, %26 : vector<8x512xf32>
    %cst_9 = arith.constant 0.000000e+00 : f32
    %32 = vector.broadcast %cst_9 : f32 to vector<8x512xf32>
    %33 = arith.minimumf %0, %32 : vector<8x512xf32>
    %34 = arith.subf %33, %8 : vector<8x512xf32>
    %35 = arith.mulf %20, %34 : vector<8x512xf32>
    %36 = vector.shape_cast %31 : vector<8x512xf32> to vector<1x8x512xf32>
    %cst_10 = arith.constant dense<0.000000e+00> : vector<1xf32>
    %37 = vector.multi_reduction <add>, %36, %cst_10 [1, 2] : vector<1x8x512xf32> to vector<1xf32>
    %38 = vector.shape_cast %37 : vector<1xf32> to vector<1x1x1xf32>
    %39 = vector.extract %38[0, 0, 0] : f32 from vector<1x1x1xf32>
    %40 = vector.shape_cast %35 : vector<8x512xf32> to vector<1x8x512xf32>
    %cst_11 = arith.constant dense<0.000000e+00> : vector<1xf32>
    %41 = vector.multi_reduction <add>, %40, %cst_11 [1, 2] : vector<1x8x512xf32> to vector<1xf32>
    %42 = vector.shape_cast %41 : vector<1xf32> to vector<1x1x1xf32>
    %43 = vector.extract %42[0, 0, 0] : f32 from vector<1x1x1xf32>
    %cst_12 = arith.constant 0.000000e+00 : f32
    %44 = arith.subf %cst_12, %43 : f32
    %45 = vector.broadcast %39 : f32 to vector<1x8x128xf32>
    %c0_13 = arith.constant 0 : index
    %c0_14 = arith.constant 0 : index
    %c0_15 = arith.constant 0 : index
    %46 = vector.load %arg3[%c0_13, %c0_14, %c0_15] : memref<1x8x128xf32, #tpu.memory_space<vmem>>, vector<1x8x128xf32>
    tpu.vector_store %arg3[%c0_13, %c0_14, %c0_15], %45 {strides = array<i32>} : memref<1x8x128xf32, #tpu.memory_space<vmem>>, vector<1x8x128xf32>,
    %47 = vector.broadcast %44 : f32 to vector<1x8x128xf32>
    %c0_16 = arith.constant 0 : index
    %c0_17 = arith.constant 0 : index
    %c0_18 = arith.constant 0 : index
    %48 = vector.load %arg4[%c0_16, %c0_17, %c0_18] : memref<1x8x128xf32, #tpu.memory_space<vmem>>, vector<1x8x128xf32>
    tpu.vector_store %arg4[%c0_16, %c0_17, %c0_18], %47 {strides = array<i32>} : memref<1x8x128xf32, #tpu.memory_space<vmem>>, vector<1x8x128xf32>,
    return
  }
  func.func @transform_0(%arg0: i32) -> (i32, i32) {
    %c0_i32 = arith.constant 0 : i32
    %c0_i32_0 = arith.constant 0 : i32
    return %arg0, %c0_i32 : i32, i32
  }
  func.func @transform_1(%arg0: i32) -> (i32, i32) {
    %c0_i32 = arith.constant 0 : i32
    %c0_i32_0 = arith.constant 0 : i32
    return %arg0, %c0_i32 : i32, i32
  }
  func.func @transform_2(%arg0: i32) -> (i32, i32, i32) {
    %c0_i32 = arith.constant 0 : i32
    %c0_i32_0 = arith.constant 0 : i32
    %c0_i32_1 = arith.constant 0 : i32
    return %arg0, %c0_i32, %c0_i32_0 : i32, i32, i32
  }
  func.func @transform_3(%arg0: i32) -> (i32, i32, i32) {
    %c0_i32 = arith.constant 0 : i32
    %c0_i32_0 = arith.constant 0 : i32
    %c0_i32_1 = arith.constant 0 : i32
    return %arg0, %c0_i32, %c0_i32_0 : i32, i32, i32
  }
}

</mosaic_0001>

<llo_original>
// kernel: tpu_custom_call.1
$region0: #{tpu_custom_call.1}
  #allocation0 [shape = 'u32[]', space=smem, size = 0x4, offset = 0x4, fixed_abs, tag = 'smem constant byte address 0x4 - core index']
  #allocation1 [shape = 'u32[144,128]{1,0:T(1,128)}', space=vmem, size = 0x12000, scoped, tag = 'internal scratch']
  %s0 = inlined_call_operand.hbm [shape: f32[8,512], index: 0, kind: input, shape index: {}]
  %s1 = inlined_call_operand.hbm [shape: f32[8,512], index: 1, kind: input, shape index: {}]
  %s2 = inlined_call_operand.hbm [shape: f32[1,8,128], index: 2, kind: output, shape index: {0}]
  %s3 = inlined_call_operand.hbm [shape: f32[1,8,128], index: 3, kind: output, shape index: {1}]
  %4 = xla_tuple %s2, %s3
  %s5 = sld [smem:[#allocation0]]
  $region34: #{tpu_custom_call.1} parent=0
    _
  %s7 = ssub.s32 1, %s5
  %s8 = scalar_select 0, %s7, %s5
  $region1: #{tpu_custom_call.1} parent=0
    #allocation2 [shape = 'u8[16384]{0}', space=vmem, size = 0x4000, scoped, tag = 'input window, operand 0, single buffered']
    #allocation3 [shape = 's32[1]{0}', space=sflag, size = 0x4, scoped, tag = 'scoped memory for tpu_custom_call.1']
    #allocation4 [shape = 's32[1]{0}', space=sflag, size = 0x4, scoped, tag = 'scoped memory for tpu_custom_call.1']
    #allocation5 [shape = 'u8[16384]{0}', space=vmem, size = 0x4000, scoped, tag = 'input window, operand 1, single buffered']
    #allocation6 [shape = 's32[1]{0}', space=sflag, size = 0x4, scoped, tag = 'scoped memory for tpu_custom_call.1']
    #allocation7 [shape = 'u8[4096]{0}', space=vmem, size = 0x1000, scoped, tag = 'output window, operand 0, single buffered']
    #allocation8 [shape = 'u8[4096]{0}', space=vmem, size = 0x1000, scoped, tag = 'output window, operand 1, single buffered']
    #allocation9 [shape = 's32[1]{0}', space=sflag, size = 0x4, scoped, tag = 'scoped memory for tpu_custom_call.1']
    %9 = vsyncpa [#allocation3], 0
    %10 = vsyncpa [#allocation6], 0
    %11 = vsyncpa [#allocation4], 0
    %12 = vsyncpa [#allocation9], 0
    // Predicated region
    $region2: #{tpu_custom_call.1} parent=1 // pred_check
      _
    $region3: #{tpu_custom_call.1} parent=1 // pred_check_branch
      %14 = sbr.rel (0) target = $region5
    $region4: #{tpu_custom_call.1} parent=1 // pred_region
      %s16 = ssub.s32 512, 512
      %17 = vsyncadd [#allocation3], %s16
      %s19 = sshll.u32 [#allocation2], 4
      %s20 = int_to_ptr.vmem [resolvable:$true] %s19
      %22 = dma.hbm_to_vmem [thread:$0]  %s0, 512, %s20, [#allocation3]
    $region5: #{tpu_custom_call.1} parent=1 // pred_fallthru
      _
    // Predicated region
    $region6: #{tpu_custom_call.1} parent=1 // pred_check
      _
    $region7: #{tpu_custom_call.1} parent=1 // pred_check_branch
      %24 = sbr.rel (0) target = $region9
    $region8: #{tpu_custom_call.1} parent=1 // pred_region
      %s26 = ssub.s32 512, 512
      %27 = vsyncadd [#allocation6], %s26
      %s29 = sshll.u32 [#allocation5], 4
      %s30 = int_to_ptr.vmem [resolvable:$true] %s29
      %32 = dma.hbm_to_vmem [thread:$0]  %s1, 512, %s30, [#allocation6]
    $region9: #{tpu_custom_call.1} parent=1 // pred_fallthru
      _
    // Predicated region
    $region10: #{tpu_custom_call.1} parent=1 // pred_check
      _
    $region11: #{tpu_custom_call.1} parent=1 // pred_check_branch
      %34 = sbr.rel (0) target = $region13
    $region12: #{tpu_custom_call.1} parent=1 // pred_region
      %35 = dma.done [#allocation3], 512
    $region13: #{tpu_custom_call.1} parent=1 // pred_fallthru
      _
    // Predicated region
    $region14: #{tpu_custom_call.1} parent=1 // pred_check
      _
    $region15: #{tpu_custom_call.1} parent=1 // pred_check_branch
      %37 = sbr.rel (0) target = $region17
    $region16: #{tpu_custom_call.1} parent=1 // pred_region
      %38 = dma.done [#allocation6], 512
    $region17: #{tpu_custom_call.1} parent=1 // pred_fallthru
      _
    %v39 = vld [vmem:[#allocation2] sm:$0xff]
    %v40 = vld [vmem:[#allocation2 + $0x8] sm:$0xff]
    %v41 = vld [vmem:[#allocation2 + $0x10] sm:$0xff]
    %v42 = vld [vmem:[#allocation2 + $0x18] sm:$0xff]
    %v43 = vld [vmem:[#allocation5] sm:$0xff]
    %v44 = vld [vmem:[#allocation5 + $0x8] sm:$0xff]
    %v45 = vld [vmem:[#allocation5 + $0x10] sm:$0xff]
    %v46 = vld [vmem:[#allocation5 + $0x18] sm:$0xff]
    %v47 = vand.u32 2147483647, %v39
    %v48 = vand.u32 2147483647, %v40
    %v49 = vand.u32 2147483647, %v41
    %v50 = vand.u32 2147483647, %v42
    %v51 = vsub.f32 0.0, %v47
    %v52 = vsub.f32 0.0, %v48
    %v53 = vsub.f32 0.0, %v49
    %v54 = vsub.f32 0.0, %v50
    %v55 = vmul.f32 %v51, 1.442695
    %v56 = vpow.pop %v55
    %v57 = vmul.f32 %v52, 1.442695
    %v58 = vpow.pop %v57
    %v59 = vmul.f32 %v53, 1.442695
    %v60 = vpow.pop %v59
    %v61 = vmul.f32 %v54, 1.442695
    %v62 = vpow.pop %v61
    %v63 = vadd.f32 %v56, 1.0
    %v64 = vadd.f32 %v58, 1.0
    %v65 = vadd.f32 %v60, 1.0
    %v66 = vadd.f32 %v62, 1.0
    %v67 = vlog2.pop %v63
    %v68 = vmul.f32 %v67, 0.6931472
    %v69 = vlog2.pop %v64
    %v70 = vmul.f32 %v69, 0.6931472
    %v71 = vlog2.pop %v65
    %v72 = vmul.f32 %v71, 0.6931472
    %v73 = vlog2.pop %v66
    %v74 = vmul.f32 %v73, 0.6931472
    %v75 = vmax.f32 %v39, 0.0
    %v76 = vmax.f32 %v40, 0.0
    %v77 = vmax.f32 %v41, 0.0
    %v78 = vmax.f32 %v42, 0.0
    %v79 = vmul.f32 %v39, %v43
    %v80 = vmul.f32 %v40, %v44
    %v81 = vmul.f32 %v41, %v45
    %v82 = vmul.f32 %v42, %v46
    %v83 = vsub.f32 %v75, %v79
    %v84 = vsub.f32 %v76, %v80
    %v85 = vsub.f32 %v77, %v81
    %v86 = vsub.f32 %v78, %v82
    %v87 = vadd.f32 %v83, %v68
    %v88 = vadd.f32 %v84, %v70
    %v89 = vadd.f32 %v85, %v72
    %v90 = vadd.f32 %v86, %v74
    %v91 = vrcp.pop %v63
    %v92 = vrcp.pop %v64
    %v93 = vrcp.pop %v65
    %v94 = vrcp.pop %v66
    %vm95 = vcmp.ge.f32.partialorder %v39, 0.0
    %vm96 = vcmp.ge.f32.partialorder %v40, 0.0
    %vm97 = vcmp.ge.f32.partialorder %v41, 0.0
    %vm98 = vcmp.ge.f32.partialorder %v42, 0.0
    %v99 = vmul.f32 %v56, %v91
    %v100 = vmul.f32 %v58, %v92
    %v101 = vmul.f32 %v60, %v93
    %v102 = vmul.f32 %v62, %v94
    %v103 = vsel %vm95, %v91, %v99
    %v104 = vsel %vm96, %v92, %v100
    %v105 = vsel %vm97, %v93, %v101
    %v106 = vsel %vm98, %v94, %v102
    %v107 = vmul.f32 %v103, %v43
    %v108 = vmul.f32 %v104, %v44
    %v109 = vmul.f32 %v105, %v45
    %v110 = vmul.f32 %v106, %v46
    %v111 = vadd.f32 %v103, %v43
    %v112 = vadd.f32 %v104, %v44
    %v113 = vadd.f32 %v105, %v45
    %v114 = vadd.f32 %v106, %v46
    %v115 = vadd.f32 %v107, %v107
    %v116 = vadd.f32 %v108, %v108
    %v117 = vadd.f32 %v109, %v109
    %v118 = vadd.f32 %v110, %v110
    %v119 = vsub.f32 %v111, %v115
    %v120 = vsub.f32 %v112, %v116
    %v121 = vsub.f32 %v113, %v117
    %v122 = vsub.f32 %v114, %v118
    %v123 = vmul.f32 %v119, %v119
    %v124 = vmul.f32 %v120, %v120
    %v125 = vmul.f32 %v121, %v121
    %v126 = vmul.f32 %v122, %v122
    %v127 = vmul.f32 %v87, %v123
    %v128 = vmul.f32 %v88, %v124
    %v129 = vmul.f32 %v89, %v125
    %v130 = vmul.f32 %v90, %v126
    %v131 = vmul.f32 %v43, -0.5
    %v132 = vmul.f32 %v44, -0.5
    %v133 = vmul.f32 %v45, -0.5
    %v134 = vmul.f32 %v46, -0.5
    %v135 = vadd.f32 %v131, 0.75
    %v136 = vadd.f32 %v132, 0.75
    %v137 = vadd.f32 %v133, 0.75
    %v138 = vadd.f32 %v134, 0.75
    %v139 = vmul.f32 %v135, %v127
    %v140 = vmul.f32 %v136, %v128
    %v141 = vmul.f32 %v137, %v129
    %v142 = vmul.f32 %v138, %v130
    %v143 = vmin.f32 %v39, 0.0
    %v144 = vmin.f32 %v40, 0.0
    %v145 = vmin.f32 %v41, 0.0
    %v146 = vmin.f32 %v42, 0.0
    %v147 = vsub.f32 %v143, %v68
    %v148 = vsub.f32 %v144, %v70
    %v149 = vsub.f32 %v145, %v72
    %v150 = vsub.f32 %v146, %v74
    %v151 = vmul.f32 %v103, %v147
    %v152 = vmul.f32 %v104, %v148
    %v153 = vmul.f32 %v105, %v149
    %v154 = vmul.f32 %v106, %v150
    %v155 = vadd.f32 %v139, %v140
    %v156 = vadd.f32 %v155, %v141
    %v157 = vadd.f32 %v156, %v142
    %158 = vadd.xlane.f32.xlu0 %v157
    %v159 = vpop.xlane.xlu0 %158
    %v160 = vrot.slane %v159, 4
    %v161 = vadd.f32 %v159, %v160
    %v162 = vrot.slane %v161, 2
    %v163 = vadd.f32 %v161, %v162
    %v164 = vrot.slane %v163, 1
    %v165 = vadd.f32 %v163, %v164
    %s166 = vtos %v165
    %v167 = vadd.f32 %v151, %v152
    %v168 = vadd.f32 %v167, %v153
    %v169 = vadd.f32 %v168, %v154
    %170 = vadd.xlane.f32.xlu0 %v169
    %v171 = vpop.xlane.xlu0 %170
    %v172 = vrot.slane %v171, 4
    %v173 = vadd.f32 %v171, %v172
    %v174 = vrot.slane %v173, 2
    %v175 = vadd.f32 %v173, %v174
    %v176 = vrot.slane %v175, 1
    %v177 = vadd.f32 %v175, %v176
    %s178 = vtos %v177
    %s179 = ssub.f32 0.0, %s178
    %v180 = vstv %s166
    %181 = vst [vmem:[#allocation7] sm:$0xff] %v180
    %v182 = vstv %s179
    %183 = vst [vmem:[#allocation8] sm:$0xff] %v182
    // Predicated region
    $region18: #{tpu_custom_call.1} parent=1 // pred_check
      _
    $region19: #{tpu_custom_call.1} parent=1 // pred_check_branch
      %185 = sbr.rel (0) target = $region21
    $region20: #{tpu_custom_call.1} parent=1 // pred_region
      %s187 = ssub.s32 128, 128
      %188 = vsyncadd [#allocation4], %s187
      %s190 = sshll.u32 [#allocation7], 4
      %s191 = int_to_ptr.vmem [resolvable:$true] %s190
      %193 = dma.vmem_to_hbm [thread:$0]  %s191, 128, %s2, [#allocation4]
    $region21: #{tpu_custom_call.1} parent=1 // pred_fallthru
      _
    // Predicated region
    $region22: #{tpu_custom_call.1} parent=1 // pred_check
      _
    $region23: #{tpu_custom_call.1} parent=1 // pred_check_branch
      %195 = sbr.rel (0) target = $region25
    $region24: #{tpu_custom_call.1} parent=1 // pred_region
      %s197 = ssub.s32 128, 128
      %198 = vsyncadd [#allocation9], %s197
      %s200 = sshll.u32 [#allocation8], 4
      %s201 = int_to_ptr.vmem [resolvable:$true] %s200
      %203 = dma.vmem_to_hbm [thread:$0]  %s201, 128, %s3, [#allocation9]
    $region25: #{tpu_custom_call.1} parent=1 // pred_fallthru
      _
    // Predicated region
    $region26: #{tpu_custom_call.1} parent=1 // pred_check
      _
    $region27: #{tpu_custom_call.1} parent=1 // pred_check_branch
      %205 = sbr.rel (0) target = $region29
    $region28: #{tpu_custom_call.1} parent=1 // pred_region
      %206 = dma.done [#allocation4], 128
    $region29: #{tpu_custom_call.1} parent=1 // pred_fallthru
      _
    // Predicated region
    $region30: #{tpu_custom_call.1} parent=1 // pred_check
      _
    $region31: #{tpu_custom_call.1} parent=1 // pred_check_branch
      %208 = sbr.rel (0) target = $region33
    $region32: #{tpu_custom_call.1} parent=1 // pred_region
      %209 = dma.done [#allocation9], 128
    $region33: #{tpu_custom_call.1} parent=1 // pred_fallthru
      _
    %210 = vsyncpa [#allocation3], 1
    %211 = vsyncpa [#allocation6], 1
    %212 = vsyncpa [#allocation4], 1
    %213 = vsyncpa [#allocation9], 1

</llo_original>
